<compile_context>
chip_gen: v7x
topology: tpu7x:2x2x1
jax: 0.10.0
libtpu: 0.0.40
codegen_flags: <defaults>
</compile_context>

<pallas_src>
import functools

import jax
import jax.numpy as jnp
from jax.experimental import pallas as pl
from jax.experimental.pallas import tpu as pltpu

SMOOTH = 1.0
GAMMA = 0.75
ALPHA = 0.7

LANES = 512          # lane-dense last dim (multiple of 128)
SUBLANES = 8
MAX_TILE_ROWS = 512  # 512x512 f32 tile = 1 MiB/input/buffer (fits all gens' VMEM)
NCORES = 2           # leading "parallel" axis -> both TensorCores on v7x


def _ftl_kernel(pred_ref, true_ref, out_ref,
                acc_tp, acc_t, acc_p,
                *, rows, tile_rows, tiles_per_core, may_be_partial):
    c = pl.program_id(0)              # core-split (parallel) axis
    i = pl.program_id(1)              # row-tile (reduction) axis
    n_inner = pl.num_programs(1)

    @pl.when(i == 0)
    def _init():
        acc_tp[...] = jnp.zeros_like(acc_tp)
        acc_t[...] = jnp.zeros_like(acc_t)
        acc_p[...] = jnp.zeros_like(acc_p)

    # Cast inside the kernel so bf16/f16 inputs cross HBM at half width.
    p = pred_ref[...].astype(jnp.float32)
    t = true_ref[...].astype(jnp.float32)

    if may_be_partial:
        tile_idx = c * tiles_per_core + i
        row_start = tile_idx * tile_rows
        is_partial = row_start + tile_rows > rows   # ragged or ghost tile

        @pl.when(is_partial)
        def _masked():
            row_ids = jax.lax.broadcasted_iota(jnp.int32, (tile_rows, LANES), 0)
            valid = (row_start + row_ids) < rows
            tm = jnp.where(valid, t, 0.0)
            pm = jnp.where(valid, p, 0.0)
            acc_tp[...] += tm * pm
            acc_t[...] += tm
            acc_p[...] += pm

        @pl.when(jnp.logical_not(is_partial))
        def _full():
            acc_tp[...] += t * p
            acc_t[...] += t
            acc_p[...] += p
    else:
        # Hot path: 1 mul + 3 adds per element, all VPU, hidden under the DMA.
        acc_tp[...] += t * p
        acc_t[...] += t
        acc_p[...] += p

    # Last inner step for this core: one cross-lane/sublane reduction, then
    # publish the three per-core partial sums broadcast over an (8,128) slab.
    @pl.when(i == n_inner - 1)
    def _finalize():
        tp = jnp.sum(acc_tp[...])
        st = jnp.sum(acc_t[...])
        sp = jnp.sum(acc_p[...])
        out_ref[0, 0, :, :] = jnp.full((SUBLANES, 128), tp, jnp.float32)
        out_ref[0, 1, :, :] = jnp.full((SUBLANES, 128), st, jnp.float32)
        out_ref[0, 2, :, :] = jnp.full((SUBLANES, 128), sp, jnp.float32)


def focal_tversky_loss(y_pred, y_true, smooth=SMOOTH, gamma=GAMMA, alpha=ALPHA):
    """Pallas TPU implementation of FocalTverskyLoss.forward (scalar f32)."""
    assert y_pred.shape == y_true.shape

    def _flat(x):
        x = jnp.ravel(x)
        if not jnp.issubdtype(x.dtype, jnp.floating):
            x = x.astype(jnp.float32)      # ints/bools -> f32; floats stay native
        return x

    p_flat = _flat(y_pred)
    t_flat = _flat(y_true)
    n = p_flat.shape[0]

    # Align the flat length to one (8, LANES) slab so the 2-D reshape is legal;
    # aligned inputs skip the pad copy entirely.
    align = SUBLANES * LANES
    n_pad = -(-n // align) * align
    if n_pad != n:
        p_flat = jnp.pad(p_flat, (0, n_pad - n))
        t_flat = jnp.pad(t_flat, (0, n_pad - n))

    rows = n_pad // LANES
    p2d = p_flat.reshape(rows, LANES)
    t2d = t_flat.reshape(rows, LANES)

    tile_rows = min(MAX_TILE_ROWS, rows)       # either full dim or 512
    n_row_tiles = pl.cdiv(rows, tile_rows)
    tiles_per_core = pl.cdiv(n_row_tiles, NCORES)
    may_be_partial = (rows % tile_rows != 0) or (n_row_tiles % NCORES != 0)

    def in_index(c, i):
        # Clamp ghost tiles (when NCORES doesn't divide n_row_tiles) onto the
        # last real tile; the kernel masks their contribution to zero.
        return (jnp.minimum(c * tiles_per_core + i, n_row_tiles - 1), 0)

    kernel = functools.partial(
        _ftl_kernel, rows=rows, tile_rows=tile_rows,
        tiles_per_core=tiles_per_core, may_be_partial=may_be_partial)

    partials = pl.pallas_call(
        kernel,
        out_shape=jax.ShapeDtypeStruct((NCORES, 3, SUBLANES, 128), jnp.float32),
        grid_spec=pltpu.PrefetchScalarGridSpec(
            num_scalar_prefetch=0,
            grid=(NCORES, tiles_per_core),
            in_specs=[
                pl.BlockSpec((tile_rows, LANES), in_index),
                pl.BlockSpec((tile_rows, LANES), in_index),
            ],
            out_specs=pl.BlockSpec((1, 3, SUBLANES, 128),
                                   lambda c, i: (c, 0, 0, 0)),
            scratch_shapes=[pltpu.VMEM((tile_rows, LANES), jnp.float32)] * 3,
        ),
        compiler_params=pltpu.CompilerParams(
            dimension_semantics=("parallel", "arbitrary"),
        ),
    )(p2d, t2d)

    # Combine per-core partials and apply the tiny scalar epilogue in JAX.
    sums = partials[:, :, 0, 0]                # (NCORES, 3)
    tp = jnp.sum(sums[:, 0])
    st = jnp.sum(sums[:, 1])
    sp = jnp.sum(sums[:, 2])
    fn = st - tp                                # sum(t*(1-p))
    fp = sp - tp                                # sum((1-t)*p)
    pt_1 = (tp + smooth) / (tp + alpha * fn + (1.0 - alpha) * fp + smooth)
    # Matches the PyTorch module exactly: pow(abs(1 - pt_1), gamma).
    return jnp.abs(1.0 - pt_1) ** gamma


def focal_tversky_loss_ref(y_pred, y_true, smooth=SMOOTH, gamma=GAMMA, alpha=ALPHA):
    """Pure-JAX reference matching the PyTorch module exactly."""
    t = jnp.ravel(y_true).astype(jnp.float32)
    p = jnp.ravel(y_pred).astype(jnp.float32)
    tp = jnp.sum(t * p)
    fn = jnp.sum(t * (1.0 - p))
    fp = jnp.sum((1.0 - t) * p)
    pt_1 = (tp + smooth) / (tp + alpha * fn + (1.0 - alpha) * fp + smooth)
    return jnp.abs(1.0 - pt_1) ** gamma


if __name__ == "__main__":
    key = jax.random.PRNGKey(0)
    k1, k2 = jax.random.split(key)
    # NCHW, small shapes: batch=2, channels=4, spatial=16x16
    y_pred = jax.nn.sigmoid(jax.random.normal(k1, (2, 4, 16, 16), jnp.float32))
    y_true = (jax.random.uniform(k2, (2, 4, 16, 16)) > 0.5).astype(jnp.float32)

    loss = focal_tversky_loss(y_pred, y_true)
    loss = jax.block_until_ready(loss)

    ref = focal_tversky_loss_ref(y_pred, y_true)
    assert jnp.allclose(loss, ref, atol=1e-5, rtol=1e-5), (loss, ref)
    print("KERNEL_OK")
</pallas_src>

<mosaic_0001>
module attributes {stable_mosaic.version = 11 : i64} {
  func.func @_ftl_kernel(%arg0: i32, %arg1: i32, %arg2: memref<8x512xf32, #tpu.memory_space<vmem>>, %arg3: memref<8x512xf32, #tpu.memory_space<vmem>>, %arg4: memref<1x3x8x128xf32, #tpu.memory_space<vmem>>, %arg5: memref<8x512xf32, #tpu.memory_space<vmem>>, %arg6: memref<8x512xf32, #tpu.memory_space<vmem>>, %arg7: memref<8x512xf32, #tpu.memory_space<vmem>>) attributes {dimension_semantics = [#tpu.dimension_semantics<parallel>, #tpu.dimension_semantics<arbitrary>], iteration_bounds = array<i64: 2, 1>, scalar_prefetch = 0 : i64, scratch_operands = 3 : i64, tpu.core_type = #tpu.core_type<tc>, window_params = [{transform_indices = @transform_0, window_bounds = array<i64: 8, 512>}, {transform_indices = @transform_1, window_bounds = array<i64: 8, 512>}, {transform_indices = @transform_2, window_bounds = array<i64: 1, 3, 8, 128>}]} {
    %c0_i32 = arith.constant 0 : i32
    %0 = arith.cmpi eq, %arg1, %c0_i32 : i32
    %1 = arith.extui %0 : i1 to i32
    %c0_i32_0 = arith.constant 0 : i32
    %2 = arith.cmpi ne, %1, %c0_i32_0 : i32
    scf.if %2 {
      %cst = arith.constant 0.000000e+00 : f32
      %18 = vector.broadcast %cst : f32 to vector<8x512xf32>
      %c0_10 = arith.constant 0 : index
      %c0_11 = arith.constant 0 : index
      %19 = vector.load %arg5[%c0_10, %c0_11] : memref<8x512xf32, #tpu.memory_space<vmem>>, vector<8x512xf32>
      tpu.vector_store %arg5[%c0_10, %c0_11], %18 {strides = array<i32>} : memref<8x512xf32, #tpu.memory_space<vmem>>, vector<8x512xf32>,
      %cst_12 = arith.constant 0.000000e+00 : f32
      %20 = vector.broadcast %cst_12 : f32 to vector<8x512xf32>
      %c0_13 = arith.constant 0 : index
      %c0_14 = arith.constant 0 : index
      %21 = vector.load %arg6[%c0_13, %c0_14] : memref<8x512xf32, #tpu.memory_space<vmem>>, vector<8x512xf32>
      tpu.vector_store %arg6[%c0_13, %c0_14], %20 {strides = array<i32>} : memref<8x512xf32, #tpu.memory_space<vmem>>, vector<8x512xf32>,
      %cst_15 = arith.constant 0.000000e+00 : f32
      %22 = vector.broadcast %cst_15 : f32 to vector<8x512xf32>
      %c0_16 = arith.constant 0 : index
      %c0_17 = arith.constant 0 : index
      %23 = vector.load %arg7[%c0_16, %c0_17] : memref<8x512xf32, #tpu.memory_space<vmem>>, vector<8x512xf32>
      tpu.vector_store %arg7[%c0_16, %c0_17], %22 {strides = array<i32>} : memref<8x512xf32, #tpu.memory_space<vmem>>, vector<8x512xf32>,
    } else {
    }
    %c0 = arith.constant 0 : index
    %c0_1 = arith.constant 0 : index
    %3 = vector.load %arg2[%c0, %c0_1] : memref<8x512xf32, #tpu.memory_space<vmem>>, vector<8x512xf32>
    %c0_2 = arith.constant 0 : index
    %c0_3 = arith.constant 0 : index
    %4 = vector.load %arg3[%c0_2, %c0_3] : memref<8x512xf32, #tpu.memory_space<vmem>>, vector<8x512xf32>
    %c1_i32 = arith.constant 1 : i32
    %5 = arith.muli %arg0, %c1_i32 : i32
    %6 = arith.addi %5, %arg1 : i32
    %c8_i32 = arith.constant 8 : i32
    %7 = arith.muli %6, %c8_i32 : i32
    %c8_i32_4 = arith.constant 8 : i32
    %8 = arith.addi %7, %c8_i32_4 : i32
    %c8_i32_5 = arith.constant 8 : i32
    %9 = arith.cmpi sgt, %8, %c8_i32_5 : i32
    %10 = arith.extui %9 : i1 to i32
    %c0_i32_6 = arith.constant 0 : i32
    %11 = arith.cmpi ne, %10, %c0_i32_6 : i32
    scf.if %11 {
      %18 = tpu.iota {dimensions = array<i32: 0>} : vector<8x512xi32>
      %19 = vector.broadcast %7 : i32 to vector<8x512xi32>
      %20 = arith.addi %19, %18 : vector<8x512xi32>
      %c8_i32_10 = arith.constant 8 : i32
      %21 = vector.broadcast %c8_i32_10 : i32 to vector<8x512xi32>
      %22 = arith.cmpi slt, %20, %21 : vector<8x512xi32>
      %cst = arith.constant 0.000000e+00 : f32
      %23 = vector.broadcast %cst : f32 to vector<8x512xf32>
      %24 = arith.select %22, %4, %23 : vector<8x512xi1>, vector<8x512xf32>
      %cst_11 = arith.constant 0.000000e+00 : f32
      %25 = vector.broadcast %cst_11 : f32 to vector<8x512xf32>
      %26 = arith.select %22, %3, %25 : vector<8x512xi1>, vector<8x512xf32>
      %c0_12 = arith.constant 0 : index
      %c0_13 = arith.constant 0 : index
      %27 = vector.load %arg5[%c0_12, %c0_13] : memref<8x512xf32, #tpu.memory_space<vmem>>, vector<8x512xf32>
      %28 = arith.mulf %24, %26 : vector<8x512xf32>
      %29 = arith.addf %27, %28 : vector<8x512xf32>
      %c0_14 = arith.constant 0 : index
      %c0_15 = arith.constant 0 : index
      %30 = vector.load %arg5[%c0_14, %c0_15] : memref<8x512xf32, #tpu.memory_space<vmem>>, vector<8x512xf32>
      tpu.vector_store %arg5[%c0_14, %c0_15], %29 {strides = array<i32>} : memref<8x512xf32, #tpu.memory_space<vmem>>, vector<8x512xf32>,
      %c0_16 = arith.constant 0 : index
      %c0_17 = arith.constant 0 : index
      %31 = vector.load %arg6[%c0_16, %c0_17] : memref<8x512xf32, #tpu.memory_space<vmem>>, vector<8x512xf32>
      %32 = arith.addf %31, %24 : vector<8x512xf32>
      %c0_18 = arith.constant 0 : index
      %c0_19 = arith.constant 0 : index
      %33 = vector.load %arg6[%c0_18, %c0_19] : memref<8x512xf32, #tpu.memory_space<vmem>>, vector<8x512xf32>
      tpu.vector_store %arg6[%c0_18, %c0_19], %32 {strides = array<i32>} : memref<8x512xf32, #tpu.memory_space<vmem>>, vector<8x512xf32>,
      %c0_20 = arith.constant 0 : index
      %c0_21 = arith.constant 0 : index
      %34 = vector.load %arg7[%c0_20, %c0_21] : memref<8x512xf32, #tpu.memory_space<vmem>>, vector<8x512xf32>
      %35 = arith.addf %34, %26 : vector<8x512xf32>
      %c0_22 = arith.constant 0 : index
      %c0_23 = arith.constant 0 : index
      %36 = vector.load %arg7[%c0_22, %c0_23] : memref<8x512xf32, #tpu.memory_space<vmem>>, vector<8x512xf32>
      tpu.vector_store %arg7[%c0_22, %c0_23], %35 {strides = array<i32>} : memref<8x512xf32, #tpu.memory_space<vmem>>, vector<8x512xf32>,
    } else {
    }
    %true = arith.constant true
    %12 = arith.xori %9, %true : i1
    %13 = arith.extui %12 : i1 to i32
    %c0_i32_7 = arith.constant 0 : i32
    %14 = arith.cmpi ne, %13, %c0_i32_7 : i32
    scf.if %14 {
      %c0_10 = arith.constant 0 : index
      %c0_11 = arith.constant 0 : index
      %18 = vector.load %arg5[%c0_10, %c0_11] : memref<8x512xf32, #tpu.memory_space<vmem>>, vector<8x512xf32>
      %19 = arith.mulf %4, %3 : vector<8x512xf32>
      %20 = arith.addf %18, %19 : vector<8x512xf32>
      %c0_12 = arith.constant 0 : index
      %c0_13 = arith.constant 0 : index
      %21 = vector.load %arg5[%c0_12, %c0_13] : memref<8x512xf32, #tpu.memory_space<vmem>>, vector<8x512xf32>
      tpu.vector_store %arg5[%c0_12, %c0_13], %20 {strides = array<i32>} : memref<8x512xf32, #tpu.memory_space<vmem>>, vector<8x512xf32>,
      %c0_14 = arith.constant 0 : index
      %c0_15 = arith.constant 0 : index
      %22 = vector.load %arg6[%c0_14, %c0_15] : memref<8x512xf32, #tpu.memory_space<vmem>>, vector<8x512xf32>
      %23 = arith.addf %22, %4 : vector<8x512xf32>
      %c0_16 = arith.constant 0 : index
      %c0_17 = arith.constant 0 : index
      %24 = vector.load %arg6[%c0_16, %c0_17] : memref<8x512xf32, #tpu.memory_space<vmem>>, vector<8x512xf32>
      tpu.vector_store %arg6[%c0_16, %c0_17], %23 {strides = array<i32>} : memref<8x512xf32, #tpu.memory_space<vmem>>, vector<8x512xf32>,
      %c0_18 = arith.constant 0 : index
      %c0_19 = arith.constant 0 : index
      %25 = vector.load %arg7[%c0_18, %c0_19] : memref<8x512xf32, #tpu.memory_space<vmem>>, vector<8x512xf32>
      %26 = arith.addf %25, %3 : vector<8x512xf32>
      %c0_20 = arith.constant 0 : index
      %c0_21 = arith.constant 0 : index
      %27 = vector.load %arg7[%c0_20, %c0_21] : memref<8x512xf32, #tpu.memory_space<vmem>>, vector<8x512xf32>
      tpu.vector_store %arg7[%c0_20, %c0_21], %26 {strides = array<i32>} : memref<8x512xf32, #tpu.memory_space<vmem>>, vector<8x512xf32>,
    } else {
    }
    %c0_i32_8 = arith.constant 0 : i32
    %15 = arith.cmpi eq, %arg1, %c0_i32_8 : i32
    %16 = arith.extui %15 : i1 to i32
    %c0_i32_9 = arith.constant 0 : i32
    %17 = arith.cmpi ne, %16, %c0_i32_9 : i32
    scf.if %17 {
      %c0_10 = arith.constant 0 : index
      %c0_11 = arith.constant 0 : index
      %18 = vector.load %arg5[%c0_10, %c0_11] : memref<8x512xf32, #tpu.memory_space<vmem>>, vector<8x512xf32>
      %19 = vector.shape_cast %18 : vector<8x512xf32> to vector<1x8x512xf32>
      %cst = arith.constant dense<0.000000e+00> : vector<1xf32>
      %20 = vector.multi_reduction <add>, %19, %cst [1, 2] : vector<1x8x512xf32> to vector<1xf32>
      %21 = vector.shape_cast %20 : vector<1xf32> to vector<1x1x1xf32>
      %22 = vector.extract %21[0, 0, 0] : f32 from vector<1x1x1xf32>
      %c0_12 = arith.constant 0 : index
      %c0_13 = arith.constant 0 : index
      %23 = vector.load %arg6[%c0_12, %c0_13] : memref<8x512xf32, #tpu.memory_space<vmem>>, vector<8x512xf32>
      %24 = vector.shape_cast %23 : vector<8x512xf32> to vector<1x8x512xf32>
      %cst_14 = arith.constant dense<0.000000e+00> : vector<1xf32>
      %25 = vector.multi_reduction <add>, %24, %cst_14 [1, 2] : vector<1x8x512xf32> to vector<1xf32>
      %26 = vector.shape_cast %25 : vector<1xf32> to vector<1x1x1xf32>
      %27 = vector.extract %26[0, 0, 0] : f32 from vector<1x1x1xf32>
      %c0_15 = arith.constant 0 : index
      %c0_16 = arith.constant 0 : index
      %28 = vector.load %arg7[%c0_15, %c0_16] : memref<8x512xf32, #tpu.memory_space<vmem>>, vector<8x512xf32>
      %29 = vector.shape_cast %28 : vector<8x512xf32> to vector<1x8x512xf32>
      %cst_17 = arith.constant dense<0.000000e+00> : vector<1xf32>
      %30 = vector.multi_reduction <add>, %29, %cst_17 [1, 2] : vector<1x8x512xf32> to vector<1xf32>
      %31 = vector.shape_cast %30 : vector<1xf32> to vector<1x1x1xf32>
      %32 = vector.extract %31[0, 0, 0] : f32 from vector<1x1x1xf32>
      %33 = vector.broadcast %22 : f32 to vector<8x128xf32>
      %c0_18 = arith.constant 0 : index
      %c0_19 = arith.constant 0 : index
      %c0_20 = arith.constant 0 : index
      %c0_21 = arith.constant 0 : index
      %34 = vector.load %arg4[%c0_18, %c0_19, %c0_20, %c0_21] : memref<1x3x8x128xf32, #tpu.memory_space<vmem>>, vector<1x1x8x128xf32>
      %35 = vector.shape_cast %34 : vector<1x1x8x128xf32> to vector<8x128xf32>
      %36 = vector.shape_cast %33 : vector<8x128xf32> to vector<1x1x8x128xf32>
      tpu.vector_store %arg4[%c0_18, %c0_19, %c0_20, %c0_21], %36 {strides = array<i32>} : memref<1x3x8x128xf32, #tpu.memory_space<vmem>>, vector<1x1x8x128xf32>,
      %37 = vector.broadcast %27 : f32 to vector<8x128xf32>
      %c0_22 = arith.constant 0 : index
      %c1 = arith.constant 1 : index
      %c0_23 = arith.constant 0 : index
      %c0_24 = arith.constant 0 : index
      %38 = vector.load %arg4[%c0_22, %c1, %c0_23, %c0_24] : memref<1x3x8x128xf32, #tpu.memory_space<vmem>>, vector<1x1x8x128xf32>
      %39 = vector.shape_cast %38 : vector<1x1x8x128xf32> to vector<8x128xf32>
      %40 = vector.shape_cast %37 : vector<8x128xf32> to vector<1x1x8x128xf32>
      tpu.vector_store %arg4[%c0_22, %c1, %c0_23, %c0_24], %40 {strides = array<i32>} : memref<1x3x8x128xf32, #tpu.memory_space<vmem>>, vector<1x1x8x128xf32>,
      %41 = vector.broadcast %32 : f32 to vector<8x128xf32>
      %c0_25 = arith.constant 0 : index
      %c2 = arith.constant 2 : index
      %c0_26 = arith.constant 0 : index
      %c0_27 = arith.constant 0 : index
      %42 = vector.load %arg4[%c0_25, %c2, %c0_26, %c0_27] : memref<1x3x8x128xf32, #tpu.memory_space<vmem>>, vector<1x1x8x128xf32>
      %43 = vector.shape_cast %42 : vector<1x1x8x128xf32> to vector<8x128xf32>
      %44 = vector.shape_cast %41 : vector<8x128xf32> to vector<1x1x8x128xf32>
      tpu.vector_store %arg4[%c0_25, %c2, %c0_26, %c0_27], %44 {strides = array<i32>} : memref<1x3x8x128xf32, #tpu.memory_space<vmem>>, vector<1x1x8x128xf32>,
    } else {
    }
    return
  }
  func.func @transform_0(%arg0: i32, %arg1: i32) -> (i32, i32) {
    %c1_i32 = arith.constant 1 : i32
    %0 = arith.muli %arg0, %c1_i32 : i32
    %1 = arith.addi %0, %arg1 : i32
    %c0_i32 = arith.constant 0 : i32
    %2 = arith.minsi %1, %c0_i32 : i32
    %c0_i32_0 = arith.constant 0 : i32
    %c0_i32_1 = arith.constant 0 : i32
    return %2, %c0_i32_0 : i32, i32
  }
  func.func @transform_1(%arg0: i32, %arg1: i32) -> (i32, i32) {
    %c1_i32 = arith.constant 1 : i32
    %0 = arith.muli %arg0, %c1_i32 : i32
    %1 = arith.addi %0, %arg1 : i32
    %c0_i32 = arith.constant 0 : i32
    %2 = arith.minsi %1, %c0_i32 : i32
    %c0_i32_0 = arith.constant 0 : i32
    %c0_i32_1 = arith.constant 0 : i32
    return %2, %c0_i32_0 : i32, i32
  }
  func.func @transform_2(%arg0: i32, %arg1: i32) -> (i32, i32, i32, i32) {
    %c0_i32 = arith.constant 0 : i32
    %c0_i32_0 = arith.constant 0 : i32
    %c0_i32_1 = arith.constant 0 : i32
    %c0_i32_2 = arith.constant 0 : i32
    return %arg0, %c0_i32, %c0_i32_0, %c0_i32_1 : i32, i32, i32, i32
  }
}

</mosaic_0001>

<llo_original>
// kernel: tpu_custom_call.1
$region0: #{tpu_custom_call.1}
  #allocation0 [shape = 'u32[]', space=smem, size = 0x4, offset = 0x4, fixed_abs, tag = 'smem constant byte address 0x4 - core index']
  #allocation1 [shape = 'u32[144,128]{1,0:T(1,128)}', space=vmem, size = 0x12000, scoped, tag = 'internal scratch']
  #allocation2 [shape = 'f32[8,512]{1,0:T(8,128)}', space=vmem, size = 0x4000, scoped, tag = 'scratch operand']
  #allocation3 [shape = 'f32[8,512]{1,0:T(8,128)}', space=vmem, size = 0x4000, scoped, tag = 'scratch operand']
  #allocation4 [shape = 'f32[8,512]{1,0:T(8,128)}', space=vmem, size = 0x4000, scoped, tag = 'scratch operand']
  %s0 = inlined_call_operand.hbm [shape: f32[8,512], index: 0, kind: input, shape index: {}]
  %s1 = inlined_call_operand.hbm [shape: f32[8,512], index: 1, kind: input, shape index: {}]
  %s2 = inlined_call_operand.hbm [shape: f32[2,3,8,128], index: 2, kind: output, shape index: {}]
  %s3 = sld [smem:[#allocation0]]
  $region65: #{tpu_custom_call.1} parent=0
    _
  %s5 = ssub.s32 1, %s3
  %s6 = scalar_select 0, %s5, %s3
  $region1: #{tpu_custom_call.1} parent=0
    #allocation5 [shape = 'u8[32768]{0}', space=vmem, size = 0x8000, scoped, tag = 'input window, operand 0']
    #allocation6 [shape = 's32[2]{0}', space=sflag, size = 0x8, scoped, tag = 'scoped memory for tpu_custom_call.1']
    #allocation7 [shape = 's32[2]{0}', space=sflag, size = 0x8, scoped, tag = 'scoped memory for tpu_custom_call.1']
    #allocation8 [shape = 'u8[32768]{0}', space=vmem, size = 0x8000, scoped, tag = 'input window, operand 1']
    #allocation9 [shape = 's32[2]{0}', space=sflag, size = 0x8, scoped, tag = 'scoped memory for tpu_custom_call.1']
    #allocation10 [shape = 'u8[24576]{0}', space=vmem, size = 0x6000, scoped, tag = 'output window, operand 0']
    %7 = vsyncpa [#allocation6], 0
    %s8 = scalar_lea.sflag [#allocation6], 1
    %9 = vsyncpa %s8, 0
    %10 = vsyncpa [#allocation9], 0
    %s11 = scalar_lea.sflag [#allocation9], 1
    %12 = vsyncpa %s11, 0
    %13 = vsyncpa [#allocation7], 0
    %s14 = scalar_lea.sflag [#allocation7], 1
    %15 = vsyncpa %s14, 0
    loop: start=0, step=1, limit=4
    $region2: #{tpu_custom_call.1} parent=1 // loop_pre_header
      _
    $region3: #{tpu_custom_call.1} parent=1 // loop_header
      %s17 = sphi 0, %s21
      %p18 = scmp.ge.s32.totalorder %s17, 4
      %s24 = sphi 0, %s36
      %s25 = sphi 0, %s32
      %s26 = sphi 0, %s24
      %s27 = sphi 0, %s25
      %s28 = sphi 0, %s26
      %s29 = sphi 0, %s27
      %s45 = sphi 0, %s47
      %s48 = sphi 0, %s45
      %s49 = sphi 0, %s48
      %s65 = sphi 0, %s49
      %s77 = sphi 0, %s79
      %s80 = sphi 0, %s77
      %s81 = sphi 0, %s80
      %s97 = sphi 0, %s81
      %s103 = sphi 0, %s105
      %s106 = sphi 0, %s103
      %s107 = sphi 0, %s106
      %s123 = sphi 0, %s107
    $region4: #{tpu_custom_call.1} parent=1 // loop_header_branch
      %20 = sbr.rel (%p18) target = $region8
    $region5: #{tpu_custom_call.1} parent=1 // loop_body
      %s22 = ssub.s32 %s17, 1
      %s23 = ssub.s32 %s17, 2
      %s30 = sadd.s32 1, %s25
      %p31 = scmp.ge.s32.totalorder %s30, 1
      %s32 = scalar_select %p31, 0, %s30
      %s33 = sadd.s32 1, %s24
      %s34 = scalar_select %p31, %s33, %s24
      %p35 = scmp.ge.s32.totalorder %s34, 2
      %s36 = scalar_select %p35, 0, %s34
      %s37 = sadd.s32 %s24, %s25
      %p38 = scmp.lt.s32.totalorder %s37, 0
      %s39 = scalar_select %p38, %s37, 0
      %s40 = sadd.s32 %s36, %s32
      %p41 = scmp.lt.s32.totalorder %s40, 0
      %s42 = scalar_select %p41, %s40, 0
      %s43 = ssub.s32 %s39, %s42
      %p44 = scmp.eq.s32.totalorder %s43, 0
      %s46 = sadd.s32 %s45, 1
      %s47 = scalar_select %p44, %s45, %s46
      %p50 = pneg %p44
      %p51 = scmp.eq.s32.totalorder %s17, 1
      %p52 = por %p50, %p51
      %p53 = scmp.ne.s32.totalorder %s45, %s48
      %p54 = scmp.eq.s32.totalorder %s17, 0
      %p55 = por %p53, %p54
      %p56 = scmp.ne.s32.totalorder %s45, %s48
      %p57 = scmp.eq.s32.totalorder %s22, 1
      %p58 = por %p56, %p57
      %p59 = scmp.ne.s32.totalorder %s48, %s49
      %p60 = scmp.eq.s32.totalorder %s22, 0
      %p61 = por %p59, %p60
      %p62 = scmp.ne.s32.totalorder %s48, %s49
      %p63 = scmp.eq.s32.totalorder %s23, 1
      %p64 = por %p62, %p63
      %p66 = scmp.ne.s32.totalorder %s49, %s65
      %p67 = scmp.eq.s32.totalorder %s23, 0
      %p68 = por %p66, %p67
      %s69 = sadd.s32 %s24, %s25
      %p70 = scmp.lt.s32.totalorder %s69, 0
      %s71 = scalar_select %p70, %s69, 0
      %s72 = sadd.s32 %s36, %s32
      %p73 = scmp.lt.s32.totalorder %s72, 0
      %s74 = scalar_select %p73, %s72, 0
      %s75 = ssub.s32 %s71, %s74
      %p76 = scmp.eq.s32.totalorder %s75, 0
      %s78 = sadd.s32 %s77, 1
      %s79 = scalar_select %p76, %s77, %s78
      %p82 = pneg %p76
      %p83 = scmp.eq.s32.totalorder %s17, 1
      %p84 = por %p82, %p83
      %p85 = scmp.ne.s32.totalorder %s77, %s80
      %p86 = scmp.eq.s32.totalorder %s17, 0
      %p87 = por %p85, %p86
      %p88 = scmp.ne.s32.totalorder %s77, %s80
      %p89 = scmp.eq.s32.totalorder %s22, 1
      %p90 = por %p88, %p89
      %p91 = scmp.ne.s32.totalorder %s80, %s81
      %p92 = scmp.eq.s32.totalorder %s22, 0
      %p93 = por %p91, %p92
      %p94 = scmp.ne.s32.totalorder %s80, %s81
      %p95 = scmp.eq.s32.totalorder %s23, 1
      %p96 = por %p94, %p95
      %p98 = scmp.ne.s32.totalorder %s81, %s97
      %p99 = scmp.eq.s32.totalorder %s23, 0
      %p100 = por %p98, %p99
      %s101 = ssub.s32 %s24, %s36
      %p102 = scmp.eq.s32.totalorder %s101, 0
      %s104 = sadd.s32 %s103, 1
      %s105 = scalar_select %p102, %s103, %s104
      %p108 = pneg %p102
      %p109 = scmp.eq.s32.totalorder %s17, 1
      %p110 = por %p108, %p109
      %p111 = scmp.ne.s32.totalorder %s103, %s106
      %p112 = scmp.eq.s32.totalorder %s17, 0
      %p113 = por %p111, %p112
      %p114 = scmp.ne.s32.totalorder %s103, %s106
      %p115 = scmp.eq.s32.totalorder %s22, 1
      %p116 = por %p114, %p115
      %p117 = scmp.ne.s32.totalorder %s106, %s107
      %p118 = scmp.eq.s32.totalorder %s22, 0
      %p119 = por %p117, %p118
      %p120 = scmp.ne.s32.totalorder %s106, %s107
      %p121 = scmp.eq.s32.totalorder %s23, 1
      %p122 = por %p120, %p121
      %p124 = scmp.ne.s32.totalorder %s107, %s123
      %p125 = scmp.eq.s32.totalorder %s23, 0
      %p126 = por %p124, %p125
      %p127 = scmp.le.s32.totalorder 1, %s17
      %p128 = scmp.lt.s32.totalorder %s17, 3
      %p129 = pnand %p127, %p128
      %p130 = pneg %p129
      // Predicated region
      $region9: #{tpu_custom_call.1} parent=5 // pred_check
        _
      $region10: #{tpu_custom_call.1} parent=5 // pred_check_branch
        %132 = sbr.rel (%p129) target = $region12
      $region11: #{tpu_custom_call.1} parent=5 // pred_region
        %s133 = ssub.s32 %s17, 1
      $region12: #{tpu_custom_call.1} parent=5 // pred_fallthru
        _
      %p134 = scmp.lt.s32.totalorder %s17, 2
      // Predicated region
      $region13: #{tpu_custom_call.1} parent=5 // pred_check
        %p135 = pneg %p134
      $region14: #{tpu_custom_call.1} parent=5 // pred_check_branch
        %137 = sbr.rel (%p135) target = $region16
      $region15: #{tpu_custom_call.1} parent=5 // pred_region
        // Predicated region
        $region17: #{tpu_custom_call.1} parent=15 // pred_check
          %p138 = pneg %p55
        $region18: #{tpu_custom_call.1} parent=15 // pred_check_branch
          %140 = sbr.rel (%p138) target = $region20
        $region19: #{tpu_custom_call.1} parent=15 // pred_region
          %s141 = sand.u32 %s45, 1
          %s142 = scalar_lea.sflag [#allocation6], %s141
          %s143 = sand.u32 %s45, 1
          %s144 = smul.addr %s143, 32
          %s145 = scalar_lea.vmem [#allocation5], %s144
          %s146 = sadd.s32 %s24, %s25
          %p147 = scmp.lt.s32.totalorder %s146, 0
          %s148 = scalar_select %p147, %s146, 0
          %s150 = ssub.s32 512, 512
          %151 = vsyncadd %s142, %s150
          %s152 = smul.addr %s148, 4
          %s153 = smul.addr %s152, 128
          %s154 = scalar_lea.hbm %s0, %s153
          %s156 = sshll.u32 %s145, 4
          %s157 = int_to_ptr.vmem [resolvable:$true] %s156
          %159 = dma.hbm_to_vmem [thread:$0]  %s154, 512, %s157, %s142
        $region20: #{tpu_custom_call.1} parent=15 // pred_fallthru
          _
        // Predicated region
        $region21: #{tpu_custom_call.1} parent=15 // pred_check
          %p160 = pneg %p87
        $region22: #{tpu_custom_call.1} parent=15 // pred_check_branch
          %162 = sbr.rel (%p160) target = $region24
        $region23: #{tpu_custom_call.1} parent=15 // pred_region
          %s163 = sand.u32 %s77, 1
          %s164 = scalar_lea.sflag [#allocation9], %s163
          %s165 = sand.u32 %s77, 1
          %s166 = smul.addr %s165, 32
          %s167 = scalar_lea.vmem [#allocation8], %s166
          %s168 = sadd.s32 %s24, %s25
          %p169 = scmp.lt.s32.totalorder %s168, 0
          %s170 = scalar_select %p169, %s168, 0
          %s172 = ssub.s32 512, 512
          %173 = vsyncadd %s164, %s172
          %s174 = smul.addr %s170, 4
          %s175 = smul.addr %s174, 128
          %s176 = scalar_lea.hbm %s1, %s175
          %s178 = sshll.u32 %s167, 4
          %s179 = int_to_ptr.vmem [resolvable:$true] %s178
          %181 = dma.hbm_to_vmem [thread:$0]  %s176, 512, %s179, %s164
        $region24: #{tpu_custom_call.1} parent=15 // pred_fallthru
          _
      $region16: #{tpu_custom_call.1} parent=5 // pred_fallthru
        _
      %p182 = scmp.le.s32.totalorder 1, %s17
      %p183 = scmp.lt.s32.totalorder %s17, 3
      %p184 = pnand %p182, %p183
      %p185 = pneg %p184
      // Predicated region
      $region25: #{tpu_custom_call.1} parent=5 // pred_check
        _
      $region26: #{tpu_custom_call.1} parent=5 // pred_check_branch
        %187 = sbr.rel (%p184) target = $region28
      $region27: #{tpu_custom_call.1} parent=5 // pred_region
        %s188 = ssub.s32 %s17, 1
        %s189 = sand.u32 %s48, 1
        %s190 = scalar_lea.sflag [#allocation6], %s189
        %s191 = sand.u32 %s48, 1
        %s192 = smul.addr %s191, 32
        %s193 = scalar_lea.vmem [#allocation5], %s192
        // Predicated region
        $region29: #{tpu_custom_call.1} parent=27 // pred_check
          %p194 = pneg %p61
        $region30: #{tpu_custom_call.1} parent=27 // pred_check_branch
          %196 = sbr.rel (%p194) target = $region32
        $region31: #{tpu_custom_call.1} parent=27 // pred_region
          %197 = dma.done %s190, 512
        $region32: #{tpu_custom_call.1} parent=27 // pred_fallthru
          _
        %s198 = sand.u32 %s80, 1
        %s199 = scalar_lea.sflag [#allocation9], %s198
        %s200 = sand.u32 %s80, 1
        %s201 = smul.addr %s200, 32
        %s202 = scalar_lea.vmem [#allocation8], %s201
        // Predicated region
        $region33: #{tpu_custom_call.1} parent=27 // pred_check
          %p203 = pneg %p93
        $region34: #{tpu_custom_call.1} parent=27 // pred_check_branch
          %205 = sbr.rel (%p203) target = $region36
        $region35: #{tpu_custom_call.1} parent=27 // pred_region
          %206 = dma.done %s199, 512
        $region36: #{tpu_custom_call.1} parent=27 // pred_fallthru
          _
        %s207 = sand.u32 %s48, 1
        %s208 = scalar_lea.sflag [#allocation6], %s207
        %s209 = sand.u32 %s48, 1
        %s210 = smul.addr %s209, 32
        %s211 = scalar_lea.vmem [#allocation5], %s210
        %p212 = pneg %p61
        %p213 = pneg %p58
        %s214 = sand.u32 %s80, 1
        %s215 = scalar_lea.sflag [#allocation9], %s214
        %s216 = sand.u32 %s80, 1
        %s217 = smul.addr %s216, 32
        %s218 = scalar_lea.vmem [#allocation8], %s217
        %p219 = pneg %p93
        %p220 = pneg %p90
        %p221 = pneg %p119
        %p222 = pneg %p116
        %s223 = sand.u32 %s106, 1
        %s224 = scalar_lea.sflag [#allocation7], %s223
        %s225 = sand.u32 %s106, 1
        %s226 = smul.addr %s225, 24
        %s227 = scalar_lea.vmem [#allocation10], %s226
        %s228 = sadd.s32 %s26, %s27
        %p229 = scmp.lt.s32.totalorder %s228, 0
        %s230 = scalar_select %p229, %s228, 0
        %s231 = sadd.s32 %s26, %s27
        %p232 = scmp.lt.s32.totalorder %s231, 0
        %s233 = scalar_select %p232, %s231, 0
        %p234 = scmp.eq.s32.totalorder %s27, 0
        // Predicated region
        $region37: #{tpu_custom_call.1} parent=27 // pred_check
          %p235 = pneg %p234
        $region38: #{tpu_custom_call.1} parent=27 // pred_check_branch
          %237 = sbr.rel (%p235) target = $region40
        $region39: #{tpu_custom_call.1} parent=27 // pred_region
          %238 = vst [vmem:[#allocation2] sm:$0xff] 0.0
          %239 = vst [vmem:[#allocation2 + $0x8] sm:$0xff] 0.0
          %240 = vst [vmem:[#allocation2 + $0x10] sm:$0xff] 0.0
          %241 = vst [vmem:[#allocation2 + $0x18] sm:$0xff] 0.0
          %242 = vst [vmem:[#allocation3] sm:$0xff] 0.0
          %243 = vst [vmem:[#allocation3 + $0x8] sm:$0xff] 0.0
          %244 = vst [vmem:[#allocation3 + $0x10] sm:$0xff] 0.0
          %245 = vst [vmem:[#allocation3 + $0x18] sm:$0xff] 0.0
          %246 = vst [vmem:[#allocation4] sm:$0xff] 0.0
          %247 = vst [vmem:[#allocation4 + $0x8] sm:$0xff] 0.0
          %248 = vst [vmem:[#allocation4 + $0x10] sm:$0xff] 0.0
          %249 = vst [vmem:[#allocation4 + $0x18] sm:$0xff] 0.0
        $region40: #{tpu_custom_call.1} parent=27 // pred_fallthru
          _
        %v250 = vld [vmem:[%s193] sm:$0xff]
        %v251 = vld [vmem:[%s193 + $0x8] sm:$0xff]
        %v252 = vld [vmem:[%s193 + $0x10] sm:$0xff]
        %v253 = vld [vmem:[%s193 + $0x18] sm:$0xff]
        %v254 = vld [vmem:[%s202] sm:$0xff]
        %v255 = vld [vmem:[%s202 + $0x8] sm:$0xff]
        %v256 = vld [vmem:[%s202 + $0x10] sm:$0xff]
        %v257 = vld [vmem:[%s202 + $0x18] sm:$0xff]
        %s258 = sadd.s32 %s26, %s27
        %s259 = smul.u32 %s258, 8
        %s260 = sadd.s32 %s259, 8
        %p261 = scmp.gt.s32.totalorder %s260, 8
        // Predicated region
        $region41: #{tpu_custom_call.1} parent=27 // pred_check
          %p262 = pneg %p261
        $region42: #{tpu_custom_call.1} parent=27 // pred_check_branch
          %264 = sbr.rel (%p262) target = $region44
        $region43: #{tpu_custom_call.1} parent=27 // pred_region
          %v265 = vlaneseq
          %v266 = vshrl.u32 %v265, 7
          %v267 = vstv %s259
          %v268 = vadd.s32 %v267, %v266
          %vm269 = vcmp.lt.s32.totalorder %v268, 8
          %v270 = vsel %vm269, %v254, 0.0
          %v271 = vsel %vm269, %v255, 0.0
          %v272 = vsel %vm269, %v256, 0.0
          %v273 = vsel %vm269, %v257, 0.0
          %v274 = vsel %vm269, %v250, 0.0
          %v275 = vsel %vm269, %v251, 0.0
          %v276 = vsel %vm269, %v252, 0.0
          %v277 = vsel %vm269, %v253, 0.0
          %v278 = vld [vmem:[#allocation2] sm:$0xff]
          %v279 = vld [vmem:[#allocation2 + $0x8] sm:$0xff]
          %v280 = vld [vmem:[#allocation2 + $0x10] sm:$0xff]
          %v281 = vld [vmem:[#allocation2 + $0x18] sm:$0xff]
          %v282 = vmul.f32 %v270, %v274
          %v283 = vmul.f32 %v271, %v275
          %v284 = vmul.f32 %v272, %v276
          %v285 = vmul.f32 %v273, %v277
          %v286 = vadd.f32 %v278, %v282
          %v287 = vadd.f32 %v279, %v283
          %v288 = vadd.f32 %v280, %v284
          %v289 = vadd.f32 %v281, %v285
          %290 = vst [vmem:[#allocation2] sm:$0xff] %v286
          %291 = vst [vmem:[#allocation2 + $0x8] sm:$0xff] %v287
          %292 = vst [vmem:[#allocation2 + $0x10] sm:$0xff] %v288
          %293 = vst [vmem:[#allocation2 + $0x18] sm:$0xff] %v289
          %v294 = vld [vmem:[#allocation3] sm:$0xff]
          %v295 = vld [vmem:[#allocation3 + $0x8] sm:$0xff]
          %v296 = vld [vmem:[#allocation3 + $0x10] sm:$0xff]
          %v297 = vld [vmem:[#allocation3 + $0x18] sm:$0xff]
          %v298 = vadd.f32 %v294, %v270
          %v299 = vadd.f32 %v295, %v271
          %v300 = vadd.f32 %v296, %v272
          %v301 = vadd.f32 %v297, %v273
          %302 = vst [vmem:[#allocation3] sm:$0xff] %v298
          %303 = vst [vmem:[#allocation3 + $0x8] sm:$0xff] %v299
          %304 = vst [vmem:[#allocation3 + $0x10] sm:$0xff] %v300
          %305 = vst [vmem:[#allocation3 + $0x18] sm:$0xff] %v301
          %v306 = vld [vmem:[#allocation4] sm:$0xff]
          %v307 = vld [vmem:[#allocation4 + $0x8] sm:$0xff]
          %v308 = vld [vmem:[#allocation4 + $0x10] sm:$0xff]
          %v309 = vld [vmem:[#allocation4 + $0x18] sm:$0xff]
          %v310 = vadd.f32 %v306, %v274
          %v311 = vadd.f32 %v307, %v275
          %v312 = vadd.f32 %v308, %v276
          %v313 = vadd.f32 %v309, %v277
          %314 = vst [vmem:[#allocation4] sm:$0xff] %v310
          %315 = vst [vmem:[#allocation4 + $0x8] sm:$0xff] %v311
          %316 = vst [vmem:[#allocation4 + $0x10] sm:$0xff] %v312
          %317 = vst [vmem:[#allocation4 + $0x18] sm:$0xff] %v313
        $region44: #{tpu_custom_call.1} parent=27 // pred_fallthru
          _
        %p318 = scmp.le.s32.totalorder %s260, 8
        // Predicated region
        $region45: #{tpu_custom_call.1} parent=27 // pred_check
          %p319 = pneg %p318
        $region46: #{tpu_custom_call.1} parent=27 // pred_check_branch
          %321 = sbr.rel (%p319) target = $region48
        $region47: #{tpu_custom_call.1} parent=27 // pred_region
          %v322 = vld [vmem:[#allocation2] sm:$0xff]
          %v323 = vld [vmem:[#allocation2 + $0x8] sm:$0xff]
          %v324 = vld [vmem:[#allocation2 + $0x10] sm:$0xff]
          %v325 = vld [vmem:[#allocation2 + $0x18] sm:$0xff]
          %v326 = vmul.f32 %v254, %v250
          %v327 = vmul.f32 %v255, %v251
          %v328 = vmul.f32 %v256, %v252
          %v329 = vmul.f32 %v257, %v253
          %v330 = vadd.f32 %v322, %v326
          %v331 = vadd.f32 %v323, %v327
          %v332 = vadd.f32 %v324, %v328
          %v333 = vadd.f32 %v325, %v329
          %334 = vst [vmem:[#allocation2] sm:$0xff] %v330
          %335 = vst [vmem:[#allocation2 + $0x8] sm:$0xff] %v331
          %336 = vst [vmem:[#allocation2 + $0x10] sm:$0xff] %v332
          %337 = vst [vmem:[#allocation2 + $0x18] sm:$0xff] %v333
          %v338 = vld [vmem:[#allocation3] sm:$0xff]
          %v339 = vld [vmem:[#allocation3 + $0x8] sm:$0xff]
          %v340 = vld [vmem:[#allocation3 + $0x10] sm:$0xff]
          %v341 = vld [vmem:[#allocation3 + $0x18] sm:$0xff]
          %v342 = vadd.f32 %v338, %v254
          %v343 = vadd.f32 %v339, %v255
          %v344 = vadd.f32 %v340, %v256
          %v345 = vadd.f32 %v341, %v257
          %346 = vst [vmem:[#allocation3] sm:$0xff] %v342
          %347 = vst [vmem:[#allocation3 + $0x8] sm:$0xff] %v343
          %348 = vst [vmem:[#allocation3 + $0x10] sm:$0xff] %v344
          %349 = vst [vmem:[#allocation3 + $0x18] sm:$0xff] %v345
          %v350 = vld [vmem:[#allocation4] sm:$0xff]
          %v351 = vld [vmem:[#allocation4 + $0x8] sm:$0xff]
          %v352 = vld [vmem:[#allocation4 + $0x10] sm:$0xff]
          %v353 = vld [vmem:[#allocation4 + $0x18] sm:$0xff]
          %v354 = vadd.f32 %v350, %v250
          %v355 = vadd.f32 %v351, %v251
          %v356 = vadd.f32 %v352, %v252
          %v357 = vadd.f32 %v353, %v253
          %358 = vst [vmem:[#allocation4] sm:$0xff] %v354
          %359 = vst [vmem:[#allocation4 + $0x8] sm:$0xff] %v355
          %360 = vst [vmem:[#allocation4 + $0x10] sm:$0xff] %v356
          %361 = vst [vmem:[#allocation4 + $0x18] sm:$0xff] %v357
        $region48: #{tpu_custom_call.1} parent=27 // pred_fallthru
          _
        // Predicated region
        $region49: #{tpu_custom_call.1} parent=27 // pred_check
          %p362 = pneg %p234
        $region50: #{tpu_custom_call.1} parent=27 // pred_check_branch
          %364 = sbr.rel (%p362) target = $region52
        $region51: #{tpu_custom_call.1} parent=27 // pred_region
          %v365 = vld [vmem:[#allocation2] sm:$0xff]
          %v366 = vld [vmem:[#allocation2 + $0x8] sm:$0xff]
          %v367 = vld [vmem:[#allocation2 + $0x10] sm:$0xff]
          %v368 = vld [vmem:[#allocation2 + $0x18] sm:$0xff]
          %v369 = vadd.f32 %v365, %v366
          %v370 = vadd.f32 %v369, %v367
          %v371 = vadd.f32 %v370, %v368
          %372 = vadd.xlane.f32.xlu0 %v371
          %v373 = vpop.xlane.xlu0 %372
          %v374 = vrot.slane %v373, 4
          %v375 = vadd.f32 %v373, %v374
          %v376 = vrot.slane %v375, 2
          %v377 = vadd.f32 %v375, %v376
          %v378 = vrot.slane %v377, 1
          %v379 = vadd.f32 %v377, %v378
          %s380 = vtos %v379
          %v381 = vld [vmem:[#allocation3] sm:$0xff]
          %v382 = vld [vmem:[#allocation3 + $0x8] sm:$0xff]
          %v383 = vld [vmem:[#allocation3 + $0x10] sm:$0xff]
          %v384 = vld [vmem:[#allocation3 + $0x18] sm:$0xff]
          %v385 = vadd.f32 %v381, %v382
          %v386 = vadd.f32 %v385, %v383
          %v387 = vadd.f32 %v386, %v384
          %388 = vadd.xlane.f32.xlu0 %v387
          %v389 = vpop.xlane.xlu0 %388
          %v390 = vrot.slane %v389, 4
          %v391 = vadd.f32 %v389, %v390
          %v392 = vrot.slane %v391, 2
          %v393 = vadd.f32 %v391, %v392
          %v394 = vrot.slane %v393, 1
          %v395 = vadd.f32 %v393, %v394
          %s396 = vtos %v395
          %v397 = vld [vmem:[#allocation4] sm:$0xff]
          %v398 = vld [vmem:[#allocation4 + $0x8] sm:$0xff]
          %v399 = vld [vmem:[#allocation4 + $0x10] sm:$0xff]
          %v400 = vld [vmem:[#allocation4 + $0x18] sm:$0xff]
          %v401 = vadd.f32 %v397, %v398
          %v402 = vadd.f32 %v401, %v399
          %v403 = vadd.f32 %v402, %v400
          %404 = vadd.xlane.f32.xlu0 %v403
          %v405 = vpop.xlane.xlu0 %404
          %v406 = vrot.slane %v405, 4
          %v407 = vadd.f32 %v405, %v406
          %v408 = vrot.slane %v407, 2
          %v409 = vadd.f32 %v407, %v408
          %v410 = vrot.slane %v409, 1
          %v411 = vadd.f32 %v409, %v410
          %s412 = vtos %v411
          %v413 = vstv %s380
          %414 = vst [vmem:[%s227] sm:$0xff] %v413
          %v415 = vstv %s396
          %s416 = scalar_lea.vmem %s227, 8 [#allocation10]
          %417 = vst [vmem:[%s416] sm:$0xff] %v415
          %v418 = vstv %s412
          %s419 = scalar_lea.vmem %s227, 16 [#allocation10]
          %420 = vst [vmem:[%s419] sm:$0xff] %v418
        $region52: #{tpu_custom_call.1} parent=27 // pred_fallthru
          _
        %s421 = sand.u32 %s106, 1
        %s422 = scalar_lea.sflag [#allocation7], %s421
        %s423 = sand.u32 %s106, 1
        %s424 = smul.addr %s423, 24
        %s425 = scalar_lea.vmem [#allocation10], %s424
        // Predicated region
        $region53: #{tpu_custom_call.1} parent=27 // pred_check
          %p426 = pneg %p116
        $region54: #{tpu_custom_call.1} parent=27 // pred_check_branch
          %428 = sbr.rel (%p426) target = $region56
        $region55: #{tpu_custom_call.1} parent=27 // pred_region
          %s430 = ssub.s32 384, 384
          %431 = vsyncadd %s422, %s430
          %s432 = smul.addr %s26, 3
          %s433 = smul.addr %s432, 128
          %s434 = scalar_lea.hbm %s2, %s433
          %s435 = sshll.u32 %s425, 4
          %s436 = int_to_ptr.vmem [resolvable:$true] %s435
          %441 = dma.vmem_to_hbm [thread:$0]  %s436, 384, %s434, %s422, 128, 128, 8
        $region56: #{tpu_custom_call.1} parent=27 // pred_fallthru
          _
      $region28: #{tpu_custom_call.1} parent=5 // pred_fallthru
        _
      %p442 = scmp.le.s32.totalorder 2, %s17
      // Predicated region
      $region57: #{tpu_custom_call.1} parent=5 // pred_check
        %p443 = pneg %p442
      $region58: #{tpu_custom_call.1} parent=5 // pred_check_branch
        %445 = sbr.rel (%p443) target = $region60
      $region59: #{tpu_custom_call.1} parent=5 // pred_region
        %s446 = ssub.s32 %s17, 2
        // Predicated region
        $region61: #{tpu_custom_call.1} parent=59 // pred_check
          %p447 = pneg %p122
        $region62: #{tpu_custom_call.1} parent=59 // pred_check_branch
          %449 = sbr.rel (%p447) target = $region64
        $region63: #{tpu_custom_call.1} parent=59 // pred_region
          %s450 = sand.u32 %s107, 1
          %s451 = scalar_lea.sflag [#allocation7], %s450
          %s452 = sand.u32 %s107, 1
          %s453 = smul.addr %s452, 24
          %s454 = scalar_lea.vmem [#allocation10], %s453
          %455 = dma.done %s451, 384
        $region64: #{tpu_custom_call.1} parent=59 // pred_fallthru
          _
      $region60: #{tpu_custom_call.1} parent=5 // pred_fallthru
        _
    $region6: #{tpu_custom_call.1} parent=1 // loop_footer
      %s21 = sadd.s32 1, %s17
    $region7: #{tpu_custom_call.1} parent=1 // loop_footer_branch
      %16 = sbr.rel target = $region3
    $region8: #{tpu_custom_call.1} parent=1 // loop_exit
      _
    %456 = vsyncpa [#allocation6], 1
    %s457 = scalar_lea.sflag [#allocation6], 1
    %458 = vsyncpa %s457, 1
    %459 = vsyncpa [#allocation9], 1
    %s460 = scalar_lea.sflag [#allocation9], 1
    %461 = vsyncpa %s460, 1
    %462 = vsyncpa [#allocation7], 1
    %s463 = scalar_lea.sflag [#allocation7], 1
    %464 = vsyncpa %s463, 1

</llo_original>
